<compile_context>
chip_gen: v5e
topology: v5e:2x2
jax: 0.10.0
libtpu: 0.0.40
codegen_flags: <defaults>
</compile_context>

<pallas_src>
import numpy as np
import jax
import jax.numpy as jnp
from jax.experimental import pallas as pl
from jax.experimental.pallas import tpu as pltpu

FEAT = 128              # stand-in for the 512-dim ResNet18 feature (small-shape run)
NODE = 128              # self.node (512 in the original, scaled down)
SESS_LEN = [16, 8, 8]   # stand-in for settings.CUB200_SessLen
GAMMA = 0.5             # args.gamma
TILE_B = 256            # batch tile for the parallel grid at production sizes


def _round_up(n, m):
    return ((n + m - 1) // m) * m


def _make_head_kernel(sess, epoch, mode, gamma, b_true, node):
    """Builds the fused forward kernel for static (sess, epoch, mode)."""
    beta = 1.0 + max(epoch - 20, 0)
    inv_b = 1.0 / float(b_true)      # true-batch mean; padded rows contribute 0

    def l2norm(v):
        # Single EUP push: v * rsqrt(sum(v^2) + eps).
        # NOTE: eps placement differs slightly from PyTorch's 1/(1e-6 + ||v||);
        # relative error ~1e-6 for non-degenerate inputs, and padded all-zero
        # rows stay exactly zero (0 * finite rsqrt).
        ss = jnp.sum(v * v, axis=1, keepdims=True)
        return v * jax.lax.rsqrt(ss + 1e-12)

    def kernel(pooled_ref, wproj_ref, wcat_ref, wcls_ref, alpha_ref,
               out_ref, output_ref, slab_ref):
        # Backbone stand-in ReLU linear projection: x = relu(pool @ Wp).
        x = jnp.maximum(
            jnp.dot(pooled_ref[...], wproj_ref[...],
                    preferred_element_type=jnp.float32), 0.0)
        x_bf = x.astype(jnp.bfloat16)

        # One fused MXU matmul for fc1 and every fc_aux:
        # big = (tile_B, (sess+1)*NODE), f32 accumulate.
        big = jnp.dot(x_bf, wcat_ref[...], preferred_element_type=jnp.float32)

        out1 = big[:, 0:node]                       # fc1(x), pre-normalization
        out = l2norm(out1)                          # out = l2norm(out1)
        out_ref[...] = out
        slab_ref[:, 0:node] = out.astype(jnp.bfloat16)

        for i in range(1, sess + 1):
            out_aux = big[:, i * node:(i + 1) * node]       # fc_aux_{i+2}(x)
            if i < sess or mode != "train":
                out_aux = out_aux * alpha_ref[i:i + 1, :]   # Alpha[i]
            else:
                # alpha = sigmoid(beta * mean(out_aux, dim=0)) over the TRUE
                # batch; padded rows are exactly zero so the sum is unaffected.
                t = jnp.sum(out_aux, axis=0, keepdims=True) * inv_b
                alpha = jax.nn.sigmoid(beta * t)
                out_aux = out_aux * alpha
            # NB: uses pre-normalization out1, matching the PyTorch module.
            new_node = l2norm(out1 * gamma + out_aux)
            slab_ref[:, i * node:(i + 1) * node] = new_node.astype(jnp.bfloat16)

        # One fused, lane-dense classifier matmul against the block-diagonal
        # weight: column block i holds fc_{i+2}; off-diagonal blocks are zero,
        # so this equals concatenating fc2(out), fc3(new_node_1), ... on lanes.
        output_ref[...] = jnp.dot(slab_ref[...], wcls_ref[...],
                                  preferred_element_type=jnp.float32)

    return kernel


def prepare_lecnet_params(params, w_proj, C, sess):
    """One-time (per parameter update) weight fusion / padding / bf16 casts.

    Cache the returned dict and reuse it across forward calls: rebuilding
    these buffers per call costs as much as the kernel itself at small shapes.
    """
    c_pad = _round_up(C, 128)

    wproj_p = jnp.zeros((c_pad, FEAT), jnp.bfloat16)
    wproj_p = wproj_p.at[:C, :].set(w_proj.astype(jnp.bfloat16))

    # Fused x-side weight: [fc1 | fc_aux3 | ... | fc_aux_{sess+2}].
    w_cat = jnp.concatenate(
        [params["fc1"]] + [params[f"fc_aux{i + 2}"] for i in range(1, sess + 1)],
        axis=1).astype(jnp.bfloat16)                        # (FEAT, (sess+1)*NODE)

    # Block-diagonal classifier weight, output padded to a lane multiple.
    offs = np.cumsum([0] + list(SESS_LEN[:sess + 1])).tolist()
    total = int(offs[-1])
    total_pad = _round_up(total, 128)
    w_cls = jnp.zeros(((sess + 1) * NODE, total_pad), jnp.float32)
    w_cls = w_cls.at[0:NODE, offs[0]:offs[1]].set(params["fc2"])
    for i in range(1, sess + 1):
        w_cls = w_cls.at[i * NODE:(i + 1) * NODE, offs[i]:offs[i + 1]].set(
            params[f"fc{i + 2}"])
    w_cls = w_cls.astype(jnp.bfloat16)

    fused = {
        "wproj": wproj_p,
        "wcat": w_cat,
        "wcls": w_cls,
        "alpha": params["Alpha"].astype(jnp.float32),
        "c_pad": c_pad,
        "total": total,
        "total_pad": total_pad,
        "C": C,
        "sess": sess,
    }
    jax.block_until_ready((wproj_p, w_cat, w_cls))
    return fused


def lecnet_forward(x, fused, epoch=0, mode="train", gamma=GAMMA):
    """OneModel.forward: backbone stand-in + head, one Pallas call."""
    sess = fused["sess"]
    B, C = x.shape[0], x.shape[1]
    assert C == fused["C"]
    c_pad, total, total_pad = fused["c_pad"], fused["total"], fused["total_pad"]
    ncat = (sess + 1) * NODE

    # TODO(synk): pretrained ResNet18 backbone weights cannot be reproduced
    # in-script; deterministic stand-in = global average pool over HxW (plain
    # JAX glue) followed by a ReLU linear C -> FEAT fused into the kernel.
    pooled = jnp.mean(x, axis=(2, 3)).astype(jnp.bfloat16)   # (B, C), bf16

    # Pad batch to a bf16-sublane multiple (16) and channels to a lane
    # multiple; one fused pad op, padded rows stay exactly zero.
    b_pad = _round_up(max(B, 16), 16)

    # Batch tiling: parallel grid across batch tiles (uses both TensorCores on
    # v7x and pipelines the activation DMA).  The train-mode final-session
    # branch needs a GLOBAL batch mean, so train mode runs as a single tile.
    # TODO(synk): train batches too large for one tile need a two-pass batch
    # reduction for sigmoid(beta * mean(out_aux, dim=0)).
    if mode == "train":
        tile_b = b_pad
    else:
        tile_b = min(TILE_B, b_pad)
        b_pad = _round_up(b_pad, tile_b)
    n_tiles = b_pad // tile_b

    pooled_p = jnp.pad(pooled, ((0, b_pad - B), (0, c_pad - C)))

    kernel = _make_head_kernel(sess, epoch, mode, gamma, B, NODE)

    # VMEM budget: double-buffered activation/output tiles + resident weights
    # + scratch slab, with 2x headroom; clamp to [32 MiB, 48 MiB] so it stays
    # under v7x's 64 MiB physical VMEM while not starving the compiler.
    vmem_bytes = 2 * (
        tile_b * c_pad * 2          # pooled tile (bf16), double-buffered
        + tile_b * NODE * 4         # out tile (f32), double-buffered
        + tile_b * total_pad * 4    # output tile (f32), double-buffered
    ) + (
        c_pad * FEAT * 2 + FEAT * ncat * 2 + ncat * total_pad * 2   # weights
        + fused["alpha"].size * 4
        + tile_b * ncat * 2         # node scratch slab (bf16)
    )
    vmem_limit = max(32 << 20, min(int(vmem_bytes * 2) + (4 << 20), 48 << 20))

    out_p, output_p = pl.pallas_call(
        kernel,
        out_shape=(jax.ShapeDtypeStruct((b_pad, NODE), jnp.float32),
                   jax.ShapeDtypeStruct((b_pad, total_pad), jnp.float32)),
        grid=(n_tiles,),
        in_specs=[
            pl.BlockSpec((tile_b, c_pad), lambda i: (i, 0)),       # activations
            pl.BlockSpec((c_pad, FEAT), lambda i: (0, 0)),         # wproj (resident)
            pl.BlockSpec((FEAT, ncat), lambda i: (0, 0)),          # wcat  (resident)
            pl.BlockSpec((ncat, total_pad), lambda i: (0, 0)),     # wcls  (resident)
            pl.BlockSpec(fused["alpha"].shape, lambda i: (0, 0)),  # Alpha (resident)
        ],
        out_specs=(
            pl.BlockSpec((tile_b, NODE), lambda i: (i, 0)),
            pl.BlockSpec((tile_b, total_pad), lambda i: (i, 0)),
        ),
        scratch_shapes=[pltpu.VMEM((tile_b, ncat), jnp.bfloat16)],
        compiler_params=pltpu.CompilerParams(
            dimension_semantics=("parallel",),
            vmem_limit_bytes=vmem_limit),
    )(pooled_p, fused["wproj"], fused["wcat"], fused["wcls"], fused["alpha"])

    return out_p[:B], output_p[:B, :total]


if __name__ == "__main__":
    key = jax.random.PRNGKey(0)
    ks = jax.random.split(key, 8)

    B, C, H, W = 2, 4, 16, 16
    x = jax.random.normal(ks[0], (B, C, H, W), jnp.float32)

    def lin(k, fan_in, fan_out):
        # deterministic bias-free Linear weight, stored as (in, out)
        return jax.random.normal(k, (fan_in, fan_out), jnp.float32) / jnp.sqrt(
            jnp.asarray(fan_in, jnp.float32))

    params = {
        "fc1":     lin(ks[1], FEAT, NODE),
        "fc2":     lin(ks[2], NODE, SESS_LEN[0]),
        "fc3":     lin(ks[3], NODE, SESS_LEN[1]),
        "fc4":     lin(ks[4], NODE, SESS_LEN[2]),
        "fc_aux3": lin(ks[5], FEAT, NODE),
        "fc_aux4": lin(ks[6], FEAT, NODE),
        # register_buffer('Alpha', zeros(SessLen, node)); Alpha[0] += 1
        "Alpha":   jnp.zeros((len(SESS_LEN), NODE), jnp.float32).at[0].set(1.0),
    }
    w_proj = lin(ks[7], C, FEAT)

    sess = 2
    # Fuse/pad weights ONCE (cached across forward calls).
    fused = prepare_lecnet_params(params, w_proj, C, sess)

    out, output = lecnet_forward(x, fused, epoch=0, mode="train")
    jax.block_until_ready((out, output))

    assert out.shape == (B, NODE)
    assert output.shape == (B, sum(SESS_LEN[:sess + 1]))
    print("KERNEL_OK")
</pallas_src>

<mosaic_0001>
module attributes {stable_mosaic.version = 11 : i64} {
  func.func @kernel(%arg0: i32, %arg1: memref<16x128xbf16, #tpu.memory_space<vmem>>, %arg2: memref<128x128xbf16, #tpu.memory_space<vmem>>, %arg3: memref<128x384xbf16, #tpu.memory_space<vmem>>, %arg4: memref<384x128xbf16, #tpu.memory_space<vmem>>, %arg5: memref<3x128xf32, #tpu.memory_space<vmem>>, %arg6: memref<16x128xf32, #tpu.memory_space<vmem>>, %arg7: memref<16x128xf32, #tpu.memory_space<vmem>>, %arg8: memref<16x384xbf16, #tpu.memory_space<vmem>>) attributes {dimension_semantics = [#tpu.dimension_semantics<parallel>], iteration_bounds = array<i64: 1>, scalar_prefetch = 0 : i64, scratch_operands = 1 : i64, tpu.core_type = #tpu.core_type<tc>, window_params = [{transform_indices = @transform_0, window_bounds = array<i64: 16, 128>}, {pipeline_mode = #tpu.pipeline_mode<synchronous>, transform_indices = @transform_1, window_bounds = array<i64: 128, 128>}, {pipeline_mode = #tpu.pipeline_mode<synchronous>, transform_indices = @transform_2, window_bounds = array<i64: 128, 384>}, {pipeline_mode = #tpu.pipeline_mode<synchronous>, transform_indices = @transform_3, window_bounds = array<i64: 384, 128>}, {pipeline_mode = #tpu.pipeline_mode<synchronous>, transform_indices = @transform_4, window_bounds = array<i64: 3, 128>}, {transform_indices = @transform_5, window_bounds = array<i64: 16, 128>}, {transform_indices = @transform_6, window_bounds = array<i64: 16, 128>}]} {
    %c0 = arith.constant 0 : index
    %c0_0 = arith.constant 0 : index
    %0 = vector.load %arg1[%c0, %c0_0] : memref<16x128xbf16, #tpu.memory_space<vmem>>, vector<16x128xbf16>
    %c0_1 = arith.constant 0 : index
    %c0_2 = arith.constant 0 : index
    %1 = vector.load %arg2[%c0_1, %c0_2] : memref<128x128xbf16, #tpu.memory_space<vmem>>, vector<128x128xbf16>
    %cst = arith.constant dense<0.000000e+00> : vector<16x128xf32>
    %2 = tpu.matmul %0, %1, %cst {dimension_numbers = #tpu.dot_dimension_numbers<[1], [0], [0], [1], [0, 0, 1, 1], [], []>} : vector<16x128xbf16>, vector<128x128xbf16>, vector<16x128xf32> -> vector<16x128xf32>
    %cst_3 = arith.constant 0.000000e+00 : f32
    %3 = vector.broadcast %cst_3 : f32 to vector<16x128xf32>
    %4 = arith.maximumf %2, %3 : vector<16x128xf32>
    %5 = arith.truncf %4 : vector<16x128xf32> to vector<16x128xbf16>
    %c0_4 = arith.constant 0 : index
    %c0_5 = arith.constant 0 : index
    %6 = vector.load %arg3[%c0_4, %c0_5] : memref<128x384xbf16, #tpu.memory_space<vmem>>, vector<128x384xbf16>
    %cst_6 = arith.constant dense<0.000000e+00> : vector<16x384xf32>
    %7 = tpu.matmul %5, %6, %cst_6 {dimension_numbers = #tpu.dot_dimension_numbers<[1], [0], [0], [1], [0, 0, 1, 1], [], []>} : vector<16x128xbf16>, vector<128x384xbf16>, vector<16x384xf32> -> vector<16x384xf32>
    %8 = vector.extract_strided_slice %7 {offsets = [0, 0], sizes = [16, 128], strides = [1, 1]} : vector<16x384xf32> to vector<16x128xf32>
    %9 = arith.mulf %8, %8 : vector<16x128xf32>
    %cst_7 = arith.constant dense<0.000000e+00> : vector<16xf32>
    %10 = vector.multi_reduction <add>, %9, %cst_7 [1] : vector<16x128xf32> to vector<16xf32>
    %11 = vector.shape_cast %10 : vector<16xf32> to vector<16x1xf32>
    %cst_8 = arith.constant 9.99999996E-13 : f32
    %12 = vector.broadcast %cst_8 : f32 to vector<16x1xf32>
    %13 = arith.addf %11, %12 : vector<16x1xf32>
    %14 = math.rsqrt %13 : vector<16x1xf32>
    %15 = vector.broadcast %14 : vector<16x1xf32> to vector<16x128xf32>
    %16 = arith.mulf %8, %15 : vector<16x128xf32>
    %c0_9 = arith.constant 0 : index
    %c0_10 = arith.constant 0 : index
    %17 = vector.load %arg6[%c0_9, %c0_10] : memref<16x128xf32, #tpu.memory_space<vmem>>, vector<16x128xf32>
    tpu.vector_store %arg6[%c0_9, %c0_10], %16 {strides = array<i32>} : memref<16x128xf32, #tpu.memory_space<vmem>>, vector<16x128xf32>,
    %18 = arith.truncf %16 : vector<16x128xf32> to vector<16x128xbf16>
    %c0_11 = arith.constant 0 : index
    %c0_12 = arith.constant 0 : index
    %19 = vector.load %arg8[%c0_11, %c0_12] : memref<16x384xbf16, #tpu.memory_space<vmem>>, vector<16x128xbf16>
    tpu.vector_store %arg8[%c0_11, %c0_12], %18 {strides = array<i32>} : memref<16x384xbf16, #tpu.memory_space<vmem>>, vector<16x128xbf16>,
    %20 = vector.extract_strided_slice %7 {offsets = [0, 128], sizes = [16, 128], strides = [1, 1]} : vector<16x384xf32> to vector<16x128xf32>
    %c1 = arith.constant 1 : index
    %c0_13 = arith.constant 0 : index
    %21 = vector.load %arg5[%c1, %c0_13] : memref<3x128xf32, #tpu.memory_space<vmem>>, vector<1x128xf32>
    %22 = vector.broadcast %21 : vector<1x128xf32> to vector<16x128xf32>
    %23 = arith.mulf %20, %22 : vector<16x128xf32>
    %cst_14 = arith.constant 5.000000e-01 : f32
    %24 = vector.broadcast %cst_14 : f32 to vector<16x128xf32>
    %25 = arith.mulf %8, %24 : vector<16x128xf32>
    %26 = arith.addf %25, %23 : vector<16x128xf32>
    %27 = arith.mulf %26, %26 : vector<16x128xf32>
    %cst_15 = arith.constant dense<0.000000e+00> : vector<16xf32>
    %28 = vector.multi_reduction <add>, %27, %cst_15 [1] : vector<16x128xf32> to vector<16xf32>
    %29 = vector.shape_cast %28 : vector<16xf32> to vector<16x1xf32>
    %cst_16 = arith.constant 9.99999996E-13 : f32
    %30 = vector.broadcast %cst_16 : f32 to vector<16x1xf32>
    %31 = arith.addf %29, %30 : vector<16x1xf32>
    %32 = math.rsqrt %31 : vector<16x1xf32>
    %33 = vector.broadcast %32 : vector<16x1xf32> to vector<16x128xf32>
    %34 = arith.mulf %26, %33 : vector<16x128xf32>
    %35 = arith.truncf %34 : vector<16x128xf32> to vector<16x128xbf16>
    %c0_17 = arith.constant 0 : index
    %c128 = arith.constant 128 : index
    %36 = vector.load %arg8[%c0_17, %c128] : memref<16x384xbf16, #tpu.memory_space<vmem>>, vector<16x128xbf16>
    tpu.vector_store %arg8[%c0_17, %c128], %35 {strides = array<i32>} : memref<16x384xbf16, #tpu.memory_space<vmem>>, vector<16x128xbf16>,
    %37 = vector.extract_strided_slice %7 {offsets = [0, 256], sizes = [16, 128], strides = [1, 1]} : vector<16x384xf32> to vector<16x128xf32>
    %cst_18 = arith.constant dense<0.000000e+00> : vector<128xf32>
    %38 = vector.multi_reduction <add>, %37, %cst_18 [0] : vector<16x128xf32> to vector<128xf32>
    %39 = vector.shape_cast %38 : vector<128xf32> to vector<1x128xf32>
    %cst_19 = arith.constant 5.000000e-01 : f32
    %40 = vector.broadcast %cst_19 : f32 to vector<1x128xf32>
    %41 = arith.mulf %39, %40 : vector<1x128xf32>
    %cst_20 = arith.constant 1.000000e+00 : f32
    %42 = vector.broadcast %cst_20 : f32 to vector<1x128xf32>
    %43 = arith.mulf %42, %41 : vector<1x128xf32>
    %44 = arith.negf %43 : vector<1x128xf32>
    %45 = math.exp %44 : vector<1x128xf32>
    %cst_21 = arith.constant 1.000000e+00 : f32
    %46 = vector.broadcast %cst_21 : f32 to vector<1x128xf32>
    %47 = arith.addf %46, %45 : vector<1x128xf32>
    %48 = arith.divf %46, %47 : vector<1x128xf32>
    %49 = vector.broadcast %48 : vector<1x128xf32> to vector<16x128xf32>
    %50 = arith.mulf %37, %49 : vector<16x128xf32>
    %cst_22 = arith.constant 5.000000e-01 : f32
    %51 = vector.broadcast %cst_22 : f32 to vector<16x128xf32>
    %52 = arith.mulf %8, %51 : vector<16x128xf32>
    %53 = arith.addf %52, %50 : vector<16x128xf32>
    %54 = arith.mulf %53, %53 : vector<16x128xf32>
    %cst_23 = arith.constant dense<0.000000e+00> : vector<16xf32>
    %55 = vector.multi_reduction <add>, %54, %cst_23 [1] : vector<16x128xf32> to vector<16xf32>
    %56 = vector.shape_cast %55 : vector<16xf32> to vector<16x1xf32>
    %cst_24 = arith.constant 9.99999996E-13 : f32
    %57 = vector.broadcast %cst_24 : f32 to vector<16x1xf32>
    %58 = arith.addf %56, %57 : vector<16x1xf32>
    %59 = math.rsqrt %58 : vector<16x1xf32>
    %60 = vector.broadcast %59 : vector<16x1xf32> to vector<16x128xf32>
    %61 = arith.mulf %53, %60 : vector<16x128xf32>
    %62 = arith.truncf %61 : vector<16x128xf32> to vector<16x128xbf16>
    %c0_25 = arith.constant 0 : index
    %c256 = arith.constant 256 : index
    %63 = vector.load %arg8[%c0_25, %c256] : memref<16x384xbf16, #tpu.memory_space<vmem>>, vector<16x128xbf16>
    tpu.vector_store %arg8[%c0_25, %c256], %62 {strides = array<i32>} : memref<16x384xbf16, #tpu.memory_space<vmem>>, vector<16x128xbf16>,
    %c0_26 = arith.constant 0 : index
    %c0_27 = arith.constant 0 : index
    %64 = vector.load %arg8[%c0_26, %c0_27] : memref<16x384xbf16, #tpu.memory_space<vmem>>, vector<16x384xbf16>
    %c0_28 = arith.constant 0 : index
    %c0_29 = arith.constant 0 : index
    %65 = vector.load %arg4[%c0_28, %c0_29] : memref<384x128xbf16, #tpu.memory_space<vmem>>, vector<384x128xbf16>
    %cst_30 = arith.constant dense<0.000000e+00> : vector<16x128xf32>
    %66 = tpu.matmul %64, %65, %cst_30 {dimension_numbers = #tpu.dot_dimension_numbers<[1], [0], [0], [1], [0, 0, 1, 1], [], []>} : vector<16x384xbf16>, vector<384x128xbf16>, vector<16x128xf32> -> vector<16x128xf32>
    %c0_31 = arith.constant 0 : index
    %c0_32 = arith.constant 0 : index
    %67 = vector.load %arg7[%c0_31, %c0_32] : memref<16x128xf32, #tpu.memory_space<vmem>>, vector<16x128xf32>
    tpu.vector_store %arg7[%c0_31, %c0_32], %66 {strides = array<i32>} : memref<16x128xf32, #tpu.memory_space<vmem>>, vector<16x128xf32>,
    return
  }
  func.func @transform_0(%arg0: i32) -> (i32, i32) {
    %c0_i32 = arith.constant 0 : i32
    %c0_i32_0 = arith.constant 0 : i32
    return %arg0, %c0_i32 : i32, i32
  }
  func.func @transform_1(%arg0: i32) -> (i32, i32) {
    %c0_i32 = arith.constant 0 : i32
    %c0_i32_0 = arith.constant 0 : i32
    %c0_i32_1 = arith.constant 0 : i32
    return %c0_i32, %c0_i32_0 : i32, i32
  }
  func.func @transform_2(%arg0: i32) -> (i32, i32) {
    %c0_i32 = arith.constant 0 : i32
    %c0_i32_0 = arith.constant 0 : i32
    %c0_i32_1 = arith.constant 0 : i32
    return %c0_i32, %c0_i32_0 : i32, i32
  }
  func.func @transform_3(%arg0: i32) -> (i32, i32) {
    %c0_i32 = arith.constant 0 : i32
    %c0_i32_0 = arith.constant 0 : i32
    %c0_i32_1 = arith.constant 0 : i32
    return %c0_i32, %c0_i32_0 : i32, i32
  }
  func.func @transform_4(%arg0: i32) -> (i32, i32) {
    %c0_i32 = arith.constant 0 : i32
    %c0_i32_0 = arith.constant 0 : i32
    %c0_i32_1 = arith.constant 0 : i32
    return %c0_i32, %c0_i32_0 : i32, i32
  }
  func.func @transform_5(%arg0: i32) -> (i32, i32) {
    %c0_i32 = arith.constant 0 : i32
    %c0_i32_0 = arith.constant 0 : i32
    return %arg0, %c0_i32 : i32, i32
  }
  func.func @transform_6(%arg0: i32) -> (i32, i32) {
    %c0_i32 = arith.constant 0 : i32
    %c0_i32_0 = arith.constant 0 : i32
    return %arg0, %c0_i32 : i32, i32
  }
}

</mosaic_0001>

<llo_original>
// kernel: tpu_custom_call.1
$region0: #{tpu_custom_call.1}
  #allocation0 [shape = 'u32[]', space=smem, size = 0x4, offset = 0x4, fixed_abs, tag = 'smem constant byte address 0x4 - core index']
  #allocation1 [shape = 'u32[72,128]{1,0:T(1,128)}', space=vmem, size = 0x9000, scoped, tag = 'internal scratch']
  #allocation2 [shape = 'bf16[16,384]{1,0:T(8,128)(2,1)}', space=vmem, size = 0x3000, scoped, tag = 'scratch operand']
  %s0 = inlined_call_operand.hbm [shape: bf16[16,128], index: 0, kind: input, shape index: {}]
  %s1 = inlined_call_operand.hbm [shape: bf16[128,128], index: 1, kind: input, shape index: {}]
  %s2 = inlined_call_operand.hbm [shape: bf16[128,384], index: 2, kind: input, shape index: {}]
  %s3 = inlined_call_operand.hbm [shape: bf16[384,128], index: 3, kind: input, shape index: {}]
  %s4 = inlined_call_operand.hbm [shape: f32[3,128], index: 4, kind: input, shape index: {}]
  %s5 = inlined_call_operand.hbm [shape: f32[16,128], index: 5, kind: output, shape index: {0}]
  %s6 = inlined_call_operand.hbm [shape: f32[16,128], index: 6, kind: output, shape index: {1}]
  %7 = xla_tuple %s5, %s6
  %s8 = sld [smem:[#allocation0]]
  $region58: #{tpu_custom_call.1} parent=0
    _
  %s10 = ssub.s32 1, %s8
  %s11 = scalar_select 0, %s10, %s8
  $region1: #{tpu_custom_call.1} parent=0
    #allocation3 [shape = 'u8[4096]{0}', space=vmem, size = 0x1000, scoped, tag = 'input window, operand 0, single buffered']
    #allocation4 [shape = 's32[1]{0}', space=sflag, size = 0x4, scoped, tag = 'scoped memory for tpu_custom_call.1']
    #allocation5 [shape = 's32[1]{0}', space=sflag, size = 0x4, scoped, tag = 'scoped memory for tpu_custom_call.1']
    #allocation6 [shape = 'u8[32768]{0}', space=vmem, size = 0x8000, scoped, tag = 'input window, operand 1, single buffered']
    #allocation7 [shape = 's32[1]{0}', space=sflag, size = 0x4, scoped, tag = 'scoped memory for tpu_custom_call.1']
    #allocation8 [shape = 'u8[98304]{0}', space=vmem, size = 0x18000, scoped, tag = 'input window, operand 2, single buffered']
    #allocation9 [shape = 'u8[98304]{0}', space=vmem, size = 0x18000, scoped, tag = 'input window, operand 3, single buffered']
    #allocation10 [shape = 's32[1]{0}', space=sflag, size = 0x4, scoped, tag = 'scoped memory for tpu_custom_call.1']
    #allocation11 [shape = 'u8[2048]{0}', space=vmem, size = 0x800, scoped, tag = 'input window, operand 4, single buffered']
    #allocation12 [shape = 'u8[8192]{0}', space=vmem, size = 0x2000, scoped, tag = 'output window, operand 0, single buffered']
    #allocation13 [shape = 'u8[8192]{0}', space=vmem, size = 0x2000, scoped, tag = 'output window, operand 1, single buffered']
    #allocation14 [shape = 's32[1]{0}', space=sflag, size = 0x4, scoped, tag = 'scoped memory for tpu_custom_call.1']
    %12 = vsyncpa [#allocation4], 0
    %13 = vsyncpa [#allocation7], 0
    %14 = vsyncpa [#allocation10], 0
    %15 = vsyncpa [#allocation5], 0
    %16 = vsyncpa [#allocation14], 0
    // Predicated region
    $region2: #{tpu_custom_call.1} parent=1 // pred_check
      _
    $region3: #{tpu_custom_call.1} parent=1 // pred_check_branch
      %18 = sbr.rel (0) target = $region5
    $region4: #{tpu_custom_call.1} parent=1 // pred_region
      %20 = vsyncadd [#allocation4], 0
      %s21 = sshll.u32 %s0, 4
      %s22 = int_to_ptr.hbm [resolvable:$true] %s21
      %s23 = sshll.u32 [#allocation3], 4
      %s24 = int_to_ptr.vmem [resolvable:$true] %s23
      %29 = dma.hbm_to_vmem [thread:$0]  %s22, 128, %s24, [#allocation4], 64, 64, 4
    $region5: #{tpu_custom_call.1} parent=1 // pred_fallthru
      _
    // Predicated region
    $region6: #{tpu_custom_call.1} parent=1 // pred_check
      _
    $region7: #{tpu_custom_call.1} parent=1 // pred_check_branch
      %31 = sbr.rel (0) target = $region9
    $region8: #{tpu_custom_call.1} parent=1 // pred_region
      %33 = vsyncadd [#allocation7], 0
      %s34 = sshll.u32 %s1, 4
      %s35 = int_to_ptr.hbm [resolvable:$true] %s34
      %s36 = sshll.u32 [#allocation6], 4
      %s37 = int_to_ptr.vmem [resolvable:$true] %s36
      %42 = dma.hbm_to_vmem [thread:$0]  %s35, 1024, %s37, [#allocation7], 64, 64, 4
    $region9: #{tpu_custom_call.1} parent=1 // pred_fallthru
      _
    // Predicated region
    $region10: #{tpu_custom_call.1} parent=1 // pred_check
      _
    $region11: #{tpu_custom_call.1} parent=1 // pred_check_branch
      %44 = sbr.rel (0) target = $region13
    $region12: #{tpu_custom_call.1} parent=1 // pred_region
      %46 = vsyncadd [#allocation7], 0
      %s47 = sshll.u32 %s2, 4
      %s48 = int_to_ptr.hbm [resolvable:$true] %s47
      %s49 = sshll.u32 [#allocation8], 4
      %s50 = int_to_ptr.vmem [resolvable:$true] %s49
      %55 = dma.hbm_to_vmem [thread:$0]  %s48, 3072, %s50, [#allocation7], 192, 192, 12
    $region13: #{tpu_custom_call.1} parent=1 // pred_fallthru
      _
    // Predicated region
    $region14: #{tpu_custom_call.1} parent=1 // pred_check
      _
    $region15: #{tpu_custom_call.1} parent=1 // pred_check_branch
      %57 = sbr.rel (0) target = $region17
    $region16: #{tpu_custom_call.1} parent=1 // pred_region
      %59 = vsyncadd [#allocation10], 0
      %s60 = sshll.u32 %s3, 4
      %s61 = int_to_ptr.hbm [resolvable:$true] %s60
      %s62 = sshll.u32 [#allocation9], 4
      %s63 = int_to_ptr.vmem [resolvable:$true] %s62
      %68 = dma.hbm_to_vmem [thread:$0]  %s61, 3072, %s63, [#allocation10], 64, 64, 4
    $region17: #{tpu_custom_call.1} parent=1 // pred_fallthru
      _
    // Predicated region
    $region18: #{tpu_custom_call.1} parent=1 // pred_check
      _
    $region19: #{tpu_custom_call.1} parent=1 // pred_check_branch
      %70 = sbr.rel (0) target = $region21
    $region20: #{tpu_custom_call.1} parent=1 // pred_region
      %72 = vsyncadd [#allocation10], 0
      %s74 = sshll.u32 %s4, 4
      %s75 = int_to_ptr.hbm [resolvable:$true] %s74
      %s76 = sshll.u32 [#allocation11], 4
      %s77 = int_to_ptr.vmem [resolvable:$true] %s76
      %79 = dma.hbm_to_vmem [thread:$0]  %s75, 64, %s77, [#allocation10]
    $region21: #{tpu_custom_call.1} parent=1 // pred_fallthru
      _
    // Predicated region
    $region22: #{tpu_custom_call.1} parent=1 // pred_check
      _
    $region23: #{tpu_custom_call.1} parent=1 // pred_check_branch
      %81 = sbr.rel (0) target = $region25
    $region24: #{tpu_custom_call.1} parent=1 // pred_region
      %83 = dma.done [#allocation4], 128
    $region25: #{tpu_custom_call.1} parent=1 // pred_fallthru
      _
    // Predicated region
    $region26: #{tpu_custom_call.1} parent=1 // pred_check
      _
    $region27: #{tpu_custom_call.1} parent=1 // pred_check_branch
      %85 = sbr.rel (0) target = $region29
    $region28: #{tpu_custom_call.1} parent=1 // pred_region
      %87 = dma.done [#allocation7], 1024
    $region29: #{tpu_custom_call.1} parent=1 // pred_fallthru
      _
    // Predicated region
    $region30: #{tpu_custom_call.1} parent=1 // pred_check
      _
    $region31: #{tpu_custom_call.1} parent=1 // pred_check_branch
      %89 = sbr.rel (0) target = $region33
    $region32: #{tpu_custom_call.1} parent=1 // pred_region
      %91 = dma.done [#allocation7], 3072
    $region33: #{tpu_custom_call.1} parent=1 // pred_fallthru
      _
    // Predicated region
    $region34: #{tpu_custom_call.1} parent=1 // pred_check
      _
    $region35: #{tpu_custom_call.1} parent=1 // pred_check_branch
      %93 = sbr.rel (0) target = $region37
    $region36: #{tpu_custom_call.1} parent=1 // pred_region
      %95 = dma.done [#allocation10], 3072
    $region37: #{tpu_custom_call.1} parent=1 // pred_fallthru
      _
    // Predicated region
    $region38: #{tpu_custom_call.1} parent=1 // pred_check
      _
    $region39: #{tpu_custom_call.1} parent=1 // pred_check_branch
      %97 = sbr.rel (0) target = $region41
    $region40: #{tpu_custom_call.1} parent=1 // pred_region
      %99 = dma.done [#allocation10], 64
    $region41: #{tpu_custom_call.1} parent=1 // pred_fallthru
      _
    %v100 = vld [vmem:[#allocation3] sm:$0xf]
    %v101 = vld [vmem:[#allocation3 + $0x4] sm:$0xf]
    %v102 = vld [vmem:[#allocation6] sm:$0xf]
    %v103 = vld [vmem:[#allocation6 + $0x4] sm:$0xf]
    %v104 = vld [vmem:[#allocation6 + $0x8] sm:$0xf]
    %v105 = vld [vmem:[#allocation6 + $0xc] sm:$0xf]
    %v106 = vld [vmem:[#allocation6 + $0x10] sm:$0xf]
    %v107 = vld [vmem:[#allocation6 + $0x14] sm:$0xf]
    %v108 = vld [vmem:[#allocation6 + $0x18] sm:$0xf]
    %v109 = vld [vmem:[#allocation6 + $0x1c] sm:$0xf]
    %v110 = vld [vmem:[#allocation6 + $0x20] sm:$0xf]
    %v111 = vld [vmem:[#allocation6 + $0x24] sm:$0xf]
    %v112 = vld [vmem:[#allocation6 + $0x28] sm:$0xf]
    %v113 = vld [vmem:[#allocation6 + $0x2c] sm:$0xf]
    %v114 = vld [vmem:[#allocation6 + $0x30] sm:$0xf]
    %v115 = vld [vmem:[#allocation6 + $0x34] sm:$0xf]
    %v116 = vld [vmem:[#allocation6 + $0x38] sm:$0xf]
    %v117 = vld [vmem:[#allocation6 + $0x3c] sm:$0xf]
    %v120 = vunpack.c.l.b16 %v100
    %v121 = vunpack.c.l.b16 %v101
    %v122 = vpack.c.b16 %v121, %v120
    %v140 = vunpack.c.l.b16 %v102
    %v141 = vunpack.c.l.b16 %v103
    %v142 = vunpack.c.l.b16 %v104
    %v143 = vunpack.c.l.b16 %v105
    %v144 = vunpack.c.l.b16 %v106
    %v145 = vunpack.c.l.b16 %v107
    %v146 = vunpack.c.l.b16 %v108
    %v147 = vunpack.c.l.b16 %v109
    %v148 = vunpack.c.l.b16 %v110
    %v149 = vunpack.c.l.b16 %v111
    %v150 = vunpack.c.l.b16 %v112
    %v151 = vunpack.c.l.b16 %v113
    %v152 = vunpack.c.l.b16 %v114
    %v153 = vunpack.c.l.b16 %v115
    %v154 = vunpack.c.l.b16 %v116
    %v155 = vunpack.c.l.b16 %v117
    %v156 = vpack.c.b16 %v141, %v140
    %v157 = vpack.c.b16 %v143, %v142
    %v158 = vpack.c.b16 %v145, %v144
    %v159 = vpack.c.b16 %v147, %v146
    %v160 = vpack.c.b16 %v149, %v148
    %v161 = vpack.c.b16 %v151, %v150
    %v162 = vpack.c.b16 %v153, %v152
    %v163 = vpack.c.b16 %v155, %v154
    %172 = vmatpush.bf16.msra.mxu0 %v163
    %173 = vmatpush.bf16.msra.mxu0 %v162
    %174 = vmatpush.bf16.msra.mxu0 %v161
    %175 = vmatpush.bf16.msra.mxu0 %v160
    %176 = vmatpush.bf16.msra.mxu0 %v159
    %177 = vmatpush.bf16.msra.mxu0 %v158
    %178 = vmatpush.bf16.msra.mxu0 %v157
    %179 = vmatpush.bf16.msra.mxu0 %v156
    %180 = vmatmul.bf16.gmra.mxu0 %v122
    %v181 = vpop.f32.mrf.mxu0
    %v182 = vadd.f32 0.0, %v181
    %v183 = vpop.f32.mrf.mxu0
    %v184 = vadd.f32 0.0, %v183
    %185 = vdwg.mxu0
    %v186 = vmax.f32 %v182, 0.0
    %v187 = vmax.f32 %v184, 0.0
    %v188 = vpack.c.bf16 %v187, %v186
    %v189 = vld [vmem:[#allocation8] sm:$0xff]
    %v190 = vld [vmem:[#allocation8 + $0x8] sm:$0xf]
    %v191 = vld [vmem:[#allocation8 + $0xc] sm:$0xff]
    %v192 = vld [vmem:[#allocation8 + $0x14] sm:$0xf]
    %v193 = vld [vmem:[#allocation8 + $0x18] sm:$0xff]
    %v194 = vld [vmem:[#allocation8 + $0x20] sm:$0xf]
    %v195 = vld [vmem:[#allocation8 + $0x24] sm:$0xff]
    %v196 = vld [vmem:[#allocation8 + $0x2c] sm:$0xf]
    %v197 = vld [vmem:[#allocation8 + $0x30] sm:$0xff]
    %v198 = vld [vmem:[#allocation8 + $0x38] sm:$0xf]
    %v199 = vld [vmem:[#allocation8 + $0x3c] sm:$0xff]
    %v200 = vld [vmem:[#allocation8 + $0x44] sm:$0xf]
    %v201 = vld [vmem:[#allocation8 + $0x48] sm:$0xff]
    %v202 = vld [vmem:[#allocation8 + $0x50] sm:$0xf]
    %v203 = vld [vmem:[#allocation8 + $0x54] sm:$0xff]
    %v204 = vld [vmem:[#allocation8 + $0x5c] sm:$0xf]
    %v205 = vld [vmem:[#allocation8 + $0x60] sm:$0xff]
    %v206 = vld [vmem:[#allocation8 + $0x68] sm:$0xf]
    %v207 = vld [vmem:[#allocation8 + $0x6c] sm:$0xff]
    %v208 = vld [vmem:[#allocation8 + $0x74] sm:$0xf]
    %v209 = vld [vmem:[#allocation8 + $0x78] sm:$0xff]
    %v210 = vld [vmem:[#allocation8 + $0x80] sm:$0xf]
    %v211 = vld [vmem:[#allocation8 + $0x84] sm:$0xff]
    %v212 = vld [vmem:[#allocation8 + $0x8c] sm:$0xf]
    %v213 = vld [vmem:[#allocation8 + $0x90] sm:$0xff]
    %v214 = vld [vmem:[#allocation8 + $0x98] sm:$0xf]
    %v215 = vld [vmem:[#allocation8 + $0x9c] sm:$0xff]
    %v216 = vld [vmem:[#allocation8 + $0xa4] sm:$0xf]
    %v217 = vld [vmem:[#allocation8 + $0xa8] sm:$0xff]
    %v218 = vld [vmem:[#allocation8 + $0xb0] sm:$0xf]
    %v219 = vld [vmem:[#allocation8 + $0xb4] sm:$0xff]
    %v220 = vld [vmem:[#allocation8 + $0xbc] sm:$0xf]
    %v253 = vunpack.c.l.b16 %v189
    %v254 = vunpack.c.h.b16 %v189
    %v255 = vunpack.c.l.b16 %v190
    %v256 = vunpack.c.l.b16 %v191
    %v257 = vunpack.c.h.b16 %v191
    %v258 = vunpack.c.l.b16 %v192
    %v259 = vunpack.c.l.b16 %v193
    %v260 = vunpack.c.h.b16 %v193
    %v261 = vunpack.c.l.b16 %v194
    %v262 = vunpack.c.l.b16 %v195
    %v263 = vunpack.c.h.b16 %v195
    %v264 = vunpack.c.l.b16 %v196
    %v265 = vunpack.c.l.b16 %v197
    %v266 = vunpack.c.h.b16 %v197
    %v267 = vunpack.c.l.b16 %v198
    %v268 = vunpack.c.l.b16 %v199
    %v269 = vunpack.c.h.b16 %v199
    %v270 = vunpack.c.l.b16 %v200
    %v271 = vunpack.c.l.b16 %v201
    %v272 = vunpack.c.h.b16 %v201
    %v273 = vunpack.c.l.b16 %v202
    %v274 = vunpack.c.l.b16 %v203
    %v275 = vunpack.c.h.b16 %v203
    %v276 = vunpack.c.l.b16 %v204
    %v277 = vunpack.c.l.b16 %v205
    %v278 = vunpack.c.h.b16 %v205
    %v279 = vunpack.c.l.b16 %v206
    %v280 = vunpack.c.l.b16 %v207
    %v281 = vunpack.c.h.b16 %v207
    %v282 = vunpack.c.l.b16 %v208
    %v283 = vunpack.c.l.b16 %v209
    %v284 = vunpack.c.h.b16 %v209
    %v285 = vunpack.c.l.b16 %v210
    %v286 = vunpack.c.l.b16 %v211
    %v287 = vunpack.c.h.b16 %v211
    %v288 = vunpack.c.l.b16 %v212
    %v289 = vunpack.c.l.b16 %v213
    %v290 = vunpack.c.h.b16 %v213
    %v291 = vunpack.c.l.b16 %v214
    %v292 = vunpack.c.l.b16 %v215
    %v293 = vunpack.c.h.b16 %v215
    %v294 = vunpack.c.l.b16 %v216
    %v295 = vunpack.c.l.b16 %v217
    %v296 = vunpack.c.h.b16 %v217
    %v297 = vunpack.c.l.b16 %v218
    %v298 = vunpack.c.l.b16 %v219
    %v299 = vunpack.c.h.b16 %v219
    %v300 = vunpack.c.l.b16 %v220
    %v301 = vpack.c.b16 %v256, %v253
    %v302 = vpack.c.b16 %v257, %v254
    %v303 = vpack.c.b16 %v258, %v255
    %v304 = vpack.c.b16 %v262, %v259
    %v305 = vpack.c.b16 %v263, %v260
    %v306 = vpack.c.b16 %v264, %v261
    %v307 = vpack.c.b16 %v268, %v265
    %v308 = vpack.c.b16 %v269, %v266
    %v309 = vpack.c.b16 %v270, %v267
    %v310 = vpack.c.b16 %v274, %v271
    %v311 = vpack.c.b16 %v275, %v272
    %v312 = vpack.c.b16 %v276, %v273
    %v313 = vpack.c.b16 %v280, %v277
    %v314 = vpack.c.b16 %v281, %v278
    %v315 = vpack.c.b16 %v282, %v279
    %v316 = vpack.c.b16 %v286, %v283
    %v317 = vpack.c.b16 %v287, %v284
    %v318 = vpack.c.b16 %v288, %v285
    %v319 = vpack.c.b16 %v292, %v289
    %v320 = vpack.c.b16 %v293, %v290
    %v321 = vpack.c.b16 %v294, %v291
    %v322 = vpack.c.b16 %v298, %v295
    %v323 = vpack.c.b16 %v299, %v296
    %v324 = vpack.c.b16 %v300, %v297
    %349 = vmatpush.bf16.msra.mxu0 %v322
    %350 = vmatpush.bf16.msra.mxu0 %v319
    %351 = vmatpush.bf16.msra.mxu0 %v316
    %352 = vmatpush.bf16.msra.mxu0 %v313
    %353 = vmatpush.bf16.msra.mxu0 %v310
    %354 = vmatpush.bf16.msra.mxu0 %v307
    %355 = vmatpush.bf16.msra.mxu0 %v304
    %356 = vmatpush.bf16.msra.mxu0 %v301
    %357 = vmatmul.bf16.gmra.mxu0 %v188
    %v358 = vpop.f32.mrf.mxu0
    %v359 = vadd.f32 0.0, %v358
    %v360 = vpop.f32.mrf.mxu0
    %v361 = vadd.f32 0.0, %v360
    %362 = vdwg.mxu0
    %363 = vmatpush.bf16.msra.mxu0 %v323
    %364 = vmatpush.bf16.msra.mxu0 %v320
    %365 = vmatpush.bf16.msra.mxu0 %v317
    %366 = vmatpush.bf16.msra.mxu0 %v314
    %367 = vmatpush.bf16.msra.mxu0 %v311
    %368 = vmatpush.bf16.msra.mxu0 %v308
    %369 = vmatpush.bf16.msra.mxu0 %v305
    %370 = vmatpush.bf16.msra.mxu0 %v302
    %371 = vmatmul.bf16.gmra.mxu0 %v188
    %v372 = vpop.f32.mrf.mxu0
    %v373 = vadd.f32 0.0, %v372
    %v374 = vpop.f32.mrf.mxu0
    %v375 = vadd.f32 0.0, %v374
    %376 = vdwg.mxu0
    %377 = vmatpush.bf16.msra.mxu0 %v324
    %378 = vmatpush.bf16.msra.mxu0 %v321
    %379 = vmatpush.bf16.msra.mxu0 %v318
    %380 = vmatpush.bf16.msra.mxu0 %v315
    %381 = vmatpush.bf16.msra.mxu0 %v312
    %382 = vmatpush.bf16.msra.mxu0 %v309
    %383 = vmatpush.bf16.msra.mxu0 %v306
    %384 = vmatpush.bf16.msra.mxu0 %v303
    %385 = vmatmul.bf16.gmra.mxu0 %v188
    %v386 = vpop.f32.mrf.mxu0
    %v387 = vadd.f32 0.0, %v386
    %v388 = vpop.f32.mrf.mxu0
    %v389 = vadd.f32 0.0, %v388
    %390 = vdwg.mxu0
    %v391 = vmul.f32 %v359, %v359
    %v392 = vmul.f32 %v361, %v361
    %393 = vadd.xlane.f32.xlu0 %v391
    %v394 = vpop.xlane.xlu0 %393
    %395 = vadd.xlane.f32.xlu0 %v392
    %v396 = vpop.xlane.xlu0 %395
    %v397 = vadd.f32 %v394, 1e-12
    %v398 = vadd.f32 %v396, 1e-12
    %v399 = vrsqrt.pop %v397
    %v400 = vmul.f32 %v399, %v397
    %v401 = vmul.f32 %v400, %v399
    %v402 = vmul.f32 0.5, %v401
    %v403 = vsub.f32 1.5, %v402
    %v404 = vmul.f32 %v399, %v403
    %vm405 = vweird.f32 %v397
    %vm406 = vweird.f32 %v399
    %vm407 = vmor %vm405, %vm406
    %v408 = vsel %vm407, %v399, %v404
    %v409 = vrsqrt.pop %v398
    %v410 = vmul.f32 %v409, %v398
    %v411 = vmul.f32 %v410, %v409
    %v412 = vmul.f32 0.5, %v411
    %v413 = vsub.f32 1.5, %v412
    %v414 = vmul.f32 %v409, %v413
    %vm415 = vweird.f32 %v398
    %vm416 = vweird.f32 %v409
    %vm417 = vmor %vm415, %vm416
    %v418 = vsel %vm417, %v409, %v414
    %v419 = vmul.f32 %v359, %v408
    %v420 = vmul.f32 %v361, %v418
    %421 = vst [vmem:[#allocation12] sm:$0xff] %v419
    %422 = vst [vmem:[#allocation12 + $0x8] sm:$0xff] %v420
    %v423 = vpack.c.bf16 %v419, %v419
    %v424 = vpack.c.bf16 %v420, %v420
    %425 = vst [vmem:[#allocation2] sm:$0xf] %v423
    %426 = vst [vmem:[#allocation2 + $0xc] sm:$0xf] %v424
    %v427 = vld [vmem:[#allocation11 + $0x1] sm:$0x1]
    %v428 = vperm.slane %v427, 0
    %v429 = vmul.f32 %v373, %v428
    %v430 = vmul.f32 %v375, %v428
    %v431 = vmul.f32 %v359, 0.5
    %v432 = vmul.f32 %v361, 0.5
    %v433 = vadd.f32 %v431, %v429
    %v434 = vadd.f32 %v432, %v430
    %v435 = vmul.f32 %v433, %v433
    %v436 = vmul.f32 %v434, %v434
    %437 = vadd.xlane.f32.xlu0 %v435
    %v438 = vpop.xlane.xlu0 %437
    %439 = vadd.xlane.f32.xlu0 %v436
    %v440 = vpop.xlane.xlu0 %439
    %v441 = vadd.f32 %v438, 1e-12
    %v442 = vadd.f32 %v440, 1e-12
    %v443 = vrsqrt.pop %v441
    %v444 = vmul.f32 %v443, %v441
    %v445 = vmul.f32 %v444, %v443
    %v446 = vmul.f32 0.5, %v445
    %v447 = vsub.f32 1.5, %v446
    %v448 = vmul.f32 %v443, %v447
    %vm449 = vweird.f32 %v441
    %vm450 = vweird.f32 %v443
    %vm451 = vmor %vm449, %vm450
    %v452 = vsel %vm451, %v443, %v448
    %v453 = vrsqrt.pop %v442
    %v454 = vmul.f32 %v453, %v442
    %v455 = vmul.f32 %v454, %v453
    %v456 = vmul.f32 0.5, %v455
    %v457 = vsub.f32 1.5, %v456
    %v458 = vmul.f32 %v453, %v457
    %vm459 = vweird.f32 %v442
    %vm460 = vweird.f32 %v453
    %vm461 = vmor %vm459, %vm460
    %v462 = vsel %vm461, %v453, %v458
    %v463 = vmul.f32 %v433, %v452
    %v464 = vmul.f32 %v434, %v462
    %v465 = vpack.c.bf16 %v463, %v463
    %v466 = vpack.c.bf16 %v464, %v464
    %467 = vst [vmem:[#allocation2 + $0x4] sm:$0xf] %v465
    %468 = vst [vmem:[#allocation2 + $0x10] sm:$0xf] %v466
    %v469 = vadd.f32 %v387, %v389
    %v470 = vrot.slane %v469, 4
    %v471 = vadd.f32 %v469, %v470
    %v472 = vrot.slane %v471, 2
    %v473 = vadd.f32 %v471, %v472
    %v474 = vrot.slane %v473, 1
    %v475 = vadd.f32 %v473, %v474
    %v476 = vmul.f32 %v475, 0.5
    %v477 = vxor.u32 %v476, 2147483648
    %v478 = vmul.f32 %v477, 1.442695
    %v479 = vpow.pop %v478
    %v480 = vadd.f32 %v479, 1.0
    %v481 = vrcp.pop %v480
    %v482 = vmul.f32 %v480, %v481
    %v483 = vsub.f32 1.0, %v482
    %v484 = vmul.f32 %v481, %v483
    %v485 = vadd.f32 %v481, %v484
    %vm486 = vweird.f32 %v480
    %vm487 = vweird.f32 %v481
    %vm488 = vmor %vm486, %vm487
    %v489 = vsel %vm488, %v481, %v485
    %v490 = vand.u32 2147483647, %v480
    %vm491 = vcmp.eq.f32.partialorder %v490, 8.507059e+37
    %v492 = vand.u32 %v480, 2147483648
    %v493 = vor.u32 1.1754944e-38, %v492
    %v494 = vsel %vm491, %v493, %v489
    %v495 = vmul.f32 1.0, %v494
    %v496 = vmul.f32 %v387, %v495
    %v497 = vmul.f32 %v389, %v495
    %v498 = vadd.f32 %v431, %v496
    %v499 = vadd.f32 %v432, %v497
    %v500 = vmul.f32 %v498, %v498
    %v501 = vmul.f32 %v499, %v499
    %502 = vadd.xlane.f32.xlu0 %v500
    %v503 = vpop.xlane.xlu0 %502
    %504 = vadd.xlane.f32.xlu0 %v501
    %v505 = vpop.xlane.xlu0 %504
    %v506 = vadd.f32 %v503, 1e-12
    %v507 = vadd.f32 %v505, 1e-12
    %v508 = vrsqrt.pop %v506
    %v509 = vmul.f32 %v508, %v506
    %v510 = vmul.f32 %v509, %v508
    %v511 = vmul.f32 0.5, %v510
    %v512 = vsub.f32 1.5, %v511
    %v513 = vmul.f32 %v508, %v512
    %vm514 = vweird.f32 %v506
    %vm515 = vweird.f32 %v508
    %vm516 = vmor %vm514, %vm515
    %v517 = vsel %vm516, %v508, %v513
    %v518 = vrsqrt.pop %v507
    %v519 = vmul.f32 %v518, %v507
    %v520 = vmul.f32 %v519, %v518
    %v521 = vmul.f32 0.5, %v520
    %v522 = vsub.f32 1.5, %v521
    %v523 = vmul.f32 %v518, %v522
    %vm524 = vweird.f32 %v507
    %vm525 = vweird.f32 %v518
    %vm526 = vmor %vm524, %vm525
    %v527 = vsel %vm526, %v518, %v523
    %v528 = vmul.f32 %v498, %v517
    %v529 = vmul.f32 %v499, %v527
    %v530 = vpack.c.bf16 %v528, %v528
    %v531 = vpack.c.bf16 %v529, %v529
    %532 = vst [vmem:[#allocation2 + $0x8] sm:$0xf] %v530
    %533 = vst [vmem:[#allocation2 + $0x14] sm:$0xf] %v531
    %v534 = vld [vmem:[#allocation2] sm:$0xff]
    %v535 = vld [vmem:[#allocation2 + $0x8] sm:$0xf]
    %v536 = vld [vmem:[#allocation2 + $0xc] sm:$0xff]
    %v537 = vld [vmem:[#allocation2 + $0x14] sm:$0xf]
    %v538 = vld [vmem:[#allocation9] sm:$0xf]
    %v539 = vld [vmem:[#allocation9 + $0x4] sm:$0xf]
    %v540 = vld [vmem:[#allocation9 + $0x8] sm:$0xf]
    %v541 = vld [vmem:[#allocation9 + $0xc] sm:$0xf]
    %v542 = vld [vmem:[#allocation9 + $0x10] sm:$0xf]
    %v543 = vld [vmem:[#allocation9 + $0x14] sm:$0xf]
    %v544 = vld [vmem:[#allocation9 + $0x18] sm:$0xf]
    %v545 = vld [vmem:[#allocation9 + $0x1c] sm:$0xf]
    %v546 = vld [vmem:[#allocation9 + $0x20] sm:$0xf]
    %v547 = vld [vmem:[#allocation9 + $0x24] sm:$0xf]
    %v548 = vld [vmem:[#allocation9 + $0x28] sm:$0xf]
    %v549 = vld [vmem:[#allocation9 + $0x2c] sm:$0xf]
    %v550 = vld [vmem:[#allocation9 + $0x30] sm:$0xf]
    %v551 = vld [vmem:[#allocation9 + $0x34] sm:$0xf]
    %v552 = vld [vmem:[#allocation9 + $0x38] sm:$0xf]
    %v553 = vld [vmem:[#allocation9 + $0x3c] sm:$0xf]
    %v554 = vld [vmem:[#allocation9 + $0x40] sm:$0xf]
    %v555 = vld [vmem:[#allocation9 + $0x44] sm:$0xf]
    %v556 = vld [vmem:[#allocation9 + $0x48] sm:$0xf]
    %v557 = vld [vmem:[#allocation9 + $0x4c] sm:$0xf]
    %v558 = vld [vmem:[#allocation9 + $0x50] sm:$0xf]
    %v559 = vld [vmem:[#allocation9 + $0x54] sm:$0xf]
    %v560 = vld [vmem:[#allocation9 + $0x58] sm:$0xf]
    %v561 = vld [vmem:[#allocation9 + $0x5c] sm:$0xf]
    %v562 = vld [vmem:[#allocation9 + $0x60] sm:$0xf]
    %v563 = vld [vmem:[#allocation9 + $0x64] sm:$0xf]
    %v564 = vld [vmem:[#allocation9 + $0x68] sm:$0xf]
    %v565 = vld [vmem:[#allocation9 + $0x6c] sm:$0xf]
    %v566 = vld [vmem:[#allocation9 + $0x70] sm:$0xf]
    %v567 = vld [vmem:[#allocation9 + $0x74] sm:$0xf]
    %v568 = vld [vmem:[#allocation9 + $0x78] sm:$0xf]
    %v569 = vld [vmem:[#allocation9 + $0x7c] sm:$0xf]
    %v570 = vld [vmem:[#allocation9 + $0x80] sm:$0xf]
    %v571 = vld [vmem:[#allocation9 + $0x84] sm:$0xf]
    %v572 = vld [vmem:[#allocation9 + $0x88] sm:$0xf]
    %v573 = vld [vmem:[#allocation9 + $0x8c] sm:$0xf]
    %v574 = vld [vmem:[#allocation9 + $0x90] sm:$0xf]
    %v575 = vld [vmem:[#allocation9 + $0x94] sm:$0xf]
    %v576 = vld [vmem:[#allocation9 + $0x98] sm:$0xf]
    %v577 = vld [vmem:[#allocation9 + $0x9c] sm:$0xf]
    %v578 = vld [vmem:[#allocation9 + $0xa0] sm:$0xf]
    %v579 = vld [vmem:[#allocation9 + $0xa4] sm:$0xf]
    %v580 = vld [vmem:[#allocation9 + $0xa8] sm:$0xf]
    %v581 = vld [vmem:[#allocation9 + $0xac] sm:$0xf]
    %v582 = vld [vmem:[#allocation9 + $0xb0] sm:$0xf]
    %v583 = vld [vmem:[#allocation9 + $0xb4] sm:$0xf]
    %v584 = vld [vmem:[#allocation9 + $0xb8] sm:$0xf]
    %v585 = vld [vmem:[#allocation9 + $0xbc] sm:$0xf]
    %v590 = vunpack.c.l.b16 %v534
    %v591 = vunpack.c.h.b16 %v534
    %v592 = vunpack.c.l.b16 %v535
    %v593 = vunpack.c.l.b16 %v536
    %v594 = vunpack.c.h.b16 %v536
    %v595 = vunpack.c.l.b16 %v537
    %v596 = vpack.c.b16 %v593, %v590
    %v597 = vpack.c.b16 %v594, %v591
    %v598 = vpack.c.b16 %v595, %v592
    %v650 = vunpack.c.l.b16 %v538
    %v651 = vunpack.c.l.b16 %v539
    %v652 = vunpack.c.l.b16 %v540
    %v653 = vunpack.c.l.b16 %v541
    %v654 = vunpack.c.l.b16 %v542
    %v655 = vunpack.c.l.b16 %v543
    %v656 = vunpack.c.l.b16 %v544
    %v657 = vunpack.c.l.b16 %v545
    %v658 = vunpack.c.l.b16 %v546
    %v659 = vunpack.c.l.b16 %v547
    %v660 = vunpack.c.l.b16 %v548
    %v661 = vunpack.c.l.b16 %v549
    %v662 = vunpack.c.l.b16 %v550
    %v663 = vunpack.c.l.b16 %v551
    %v664 = vunpack.c.l.b16 %v552
    %v665 = vunpack.c.l.b16 %v553
    %v666 = vunpack.c.l.b16 %v554
    %v667 = vunpack.c.l.b16 %v555
    %v668 = vunpack.c.l.b16 %v556
    %v669 = vunpack.c.l.b16 %v557
    %v670 = vunpack.c.l.b16 %v558
    %v671 = vunpack.c.l.b16 %v559
    %v672 = vunpack.c.l.b16 %v560
    %v673 = vunpack.c.l.b16 %v561
    %v674 = vunpack.c.l.b16 %v562
    %v675 = vunpack.c.l.b16 %v563
    %v676 = vunpack.c.l.b16 %v564
    %v677 = vunpack.c.l.b16 %v565
    %v678 = vunpack.c.l.b16 %v566
    %v679 = vunpack.c.l.b16 %v567
    %v680 = vunpack.c.l.b16 %v568
    %v681 = vunpack.c.l.b16 %v569
    %v682 = vunpack.c.l.b16 %v570
    %v683 = vunpack.c.l.b16 %v571
    %v684 = vunpack.c.l.b16 %v572
    %v685 = vunpack.c.l.b16 %v573
    %v686 = vunpack.c.l.b16 %v574
    %v687 = vunpack.c.l.b16 %v575
    %v688 = vunpack.c.l.b16 %v576
    %v689 = vunpack.c.l.b16 %v577
    %v690 = vunpack.c.l.b16 %v578
    %v691 = vunpack.c.l.b16 %v579
    %v692 = vunpack.c.l.b16 %v580
    %v693 = vunpack.c.l.b16 %v581
    %v694 = vunpack.c.l.b16 %v582
    %v695 = vunpack.c.l.b16 %v583
    %v696 = vunpack.c.l.b16 %v584
    %v697 = vunpack.c.l.b16 %v585
    %v698 = vpack.c.b16 %v651, %v650
    %v699 = vpack.c.b16 %v653, %v652
    %v700 = vpack.c.b16 %v655, %v654
    %v701 = vpack.c.b16 %v657, %v656
    %v702 = vpack.c.b16 %v659, %v658
    %v703 = vpack.c.b16 %v661, %v660
    %v704 = vpack.c.b16 %v663, %v662
    %v705 = vpack.c.b16 %v665, %v664
    %v706 = vpack.c.b16 %v667, %v666
    %v707 = vpack.c.b16 %v669, %v668
    %v708 = vpack.c.b16 %v671, %v670
    %v709 = vpack.c.b16 %v673, %v672
    %v710 = vpack.c.b16 %v675, %v674
    %v711 = vpack.c.b16 %v677, %v676
    %v712 = vpack.c.b16 %v679, %v678
    %v713 = vpack.c.b16 %v681, %v680
    %v714 = vpack.c.b16 %v683, %v682
    %v715 = vpack.c.b16 %v685, %v684
    %v716 = vpack.c.b16 %v687, %v686
    %v717 = vpack.c.b16 %v689, %v688
    %v718 = vpack.c.b16 %v691, %v690
    %v719 = vpack.c.b16 %v693, %v692
    %v720 = vpack.c.b16 %v695, %v694
    %v721 = vpack.c.b16 %v697, %v696
    %746 = vmatpush.bf16.msra.mxu0 %v705
    %747 = vmatpush.bf16.msra.mxu0 %v704
    %748 = vmatpush.bf16.msra.mxu0 %v703
    %749 = vmatpush.bf16.msra.mxu0 %v702
    %750 = vmatpush.bf16.msra.mxu0 %v701
    %751 = vmatpush.bf16.msra.mxu0 %v700
    %752 = vmatpush.bf16.msra.mxu0 %v699
    %753 = vmatpush.bf16.msra.mxu0 %v698
    %754 = vmatmul.bf16.gmra.mxu0 %v596
    %v755 = vpop.f32.mrf.mxu0
    %v756 = vadd.f32 0.0, %v755
    %v757 = vpop.f32.mrf.mxu0
    %v758 = vadd.f32 0.0, %v757
    %759 = vdwg.mxu0
    %760 = vmatpush.bf16.msra.mxu0 %v713
    %761 = vmatpush.bf16.msra.mxu0 %v712
    %762 = vmatpush.bf16.msra.mxu0 %v711
    %763 = vmatpush.bf16.msra.mxu0 %v710
    %764 = vmatpush.bf16.msra.mxu0 %v709
    %765 = vmatpush.bf16.msra.mxu0 %v708
    %766 = vmatpush.bf16.msra.mxu0 %v707
    %767 = vmatpush.bf16.msra.mxu0 %v706
    %768 = vmatmul.bf16.gmra.mxu0 %v597
    %v769 = vpop.f32.mrf.mxu0
    %v770 = vadd.f32 %v756, %v769
    %v771 = vpop.f32.mrf.mxu0
    %v772 = vadd.f32 %v758, %v771
    %773 = vdwg.mxu0
    %774 = vmatpush.bf16.msra.mxu0 %v721
    %775 = vmatpush.bf16.msra.mxu0 %v720
    %776 = vmatpush.bf16.msra.mxu0 %v719
    %777 = vmatpush.bf16.msra.mxu0 %v718
    %778 = vmatpush.bf16.msra.mxu0 %v717
    %779 = vmatpush.bf16.msra.mxu0 %v716
    %780 = vmatpush.bf16.msra.mxu0 %v715
    %781 = vmatpush.bf16.msra.mxu0 %v714
    %782 = vmatmul.bf16.gmra.mxu0 %v598
    %v783 = vpop.f32.mrf.mxu0
    %v784 = vadd.f32 %v770, %v783
    %v785 = vpop.f32.mrf.mxu0
    %v786 = vadd.f32 %v772, %v785
    %787 = vdwg.mxu0
    %788 = vst [vmem:[#allocation13] sm:$0xff] %v784
    %789 = vst [vmem:[#allocation13 + $0x8] sm:$0xff] %v786
    // Predicated region
    $region42: #{tpu_custom_call.1} parent=1 // pred_check
      _
    $region43: #{tpu_custom_call.1} parent=1 // pred_check_branch
      %791 = sbr.rel (0) target = $region45
    $region44: #{tpu_custom_call.1} parent=1 // pred_region
      %793 = vsyncadd [#allocation5], 0
      %s794 = sshll.u32 [#allocation12], 4
      %s795 = int_to_ptr.vmem [resolvable:$true] %s794
      %s796 = sshll.u32 %s5, 4
      %s797 = int_to_ptr.hbm [resolvable:$true] %s796
      %802 = dma.vmem_to_hbm [thread:$0]  %s795, 256, %s797, [#allocation5], 128, 128, 8
    $region45: #{tpu_custom_call.1} parent=1 // pred_fallthru
      _
    // Predicated region
    $region46: #{tpu_custom_call.1} parent=1 // pred_check
      _
    $region47: #{tpu_custom_call.1} parent=1 // pred_check_branch
      %804 = sbr.rel (0) target = $region49
    $region48: #{tpu_custom_call.1} parent=1 // pred_region
      %806 = vsyncadd [#allocation14], 0
      %s807 = sshll.u32 [#allocation13], 4
      %s808 = int_to_ptr.vmem [resolvable:$true] %s807
      %s809 = sshll.u32 %s6, 4
      %s810 = int_to_ptr.hbm [resolvable:$true] %s809
      %815 = dma.vmem_to_hbm [thread:$0]  %s808, 256, %s810, [#allocation14], 128, 128, 8
    $region49: #{tpu_custom_call.1} parent=1 // pred_fallthru
      _
    // Predicated region
    $region50: #{tpu_custom_call.1} parent=1 // pred_check
      _
    $region51: #{tpu_custom_call.1} parent=1 // pred_check_branch
      %817 = sbr.rel (0) target = $region53
    $region52: #{tpu_custom_call.1} parent=1 // pred_region
      %819 = dma.done [#allocation5], 256
    $region53: #{tpu_custom_call.1} parent=1 // pred_fallthru
      _
    // Predicated region
    $region54: #{tpu_custom_call.1} parent=1 // pred_check
      _
    $region55: #{tpu_custom_call.1} parent=1 // pred_check_branch
      %821 = sbr.rel (0) target = $region57
    $region56: #{tpu_custom_call.1} parent=1 // pred_region
      %823 = dma.done [#allocation14], 256
    $region57: #{tpu_custom_call.1} parent=1 // pred_fallthru
      _
    %824 = vsyncpa [#allocation4], 1
    %825 = vsyncpa [#allocation7], 1
    %826 = vsyncpa [#allocation10], 1
    %827 = vsyncpa [#allocation5], 1
    %828 = vsyncpa [#allocation14], 1

</llo_original>
